<compile_context>
chip_gen: v7x
topology: tpu7x:2x2x1
jax: 0.10.0
libtpu: 0.0.40
codegen_flags: <defaults>
</compile_context>

<pallas_src>
import jax
import jax.numpy as jnp
from jax.experimental import pallas as pl
from jax.experimental.pallas import tpu as pltpu


TB = 256  # batch tile on the lane axis: multiple of 256 (v6e/v7x MXU) and 128 (v5e)


def _xavier_uniform(key, shape, fan_in, fan_out, dtype=jnp.float32):
    """Deterministic xavier-uniform init (matches xavier_uniform_ in the spec)."""
    bound = (6.0 / (fan_in + fan_out)) ** 0.5
    return jax.random.uniform(key, shape, dtype=dtype, minval=-bound, maxval=bound)


def _linear_bias(key, fan_in, fan_out, dtype=jnp.float32):
    """PyTorch default Linear bias init: U(-1/sqrt(fan_in), 1/sqrt(fan_in)). Shape [out, 1]."""
    bound = 1.0 / (fan_in ** 0.5)
    return jax.random.uniform(key, (fan_out, 1), dtype=dtype, minval=-bound, maxval=bound)


def mlp_kernel(w1_ref, b1_ref, w2_ref, b2_ref, x_ref, o_ref):
    # x_ref: [15, TB] bf16 ; w1_ref: [10, 15] bf16 ; b1_ref: [10, 1] f32
    # fc1 + ReLU  -> h: [10, TB] f32
    h = jnp.dot(w1_ref[...], x_ref[...],
                preferred_element_type=jnp.float32) + b1_ref[...]
    h = jnp.maximum(h, 0.0)
    # fc2 + ReLU  -> y: [3, TB] f32 (second dot fed bf16 for the native MXU path)
    y = jnp.dot(w2_ref[...], h.astype(jnp.bfloat16),
                preferred_element_type=jnp.float32) + b2_ref[...]
    y = jnp.maximum(y, 0.0)
    # sigmoid: exp on EUP, approx reciprocal on EUP (y >= 0 so denom in [1, 2], safe)
    o_ref[...] = pl.reciprocal(1.0 + jnp.exp(-y), approx=True).astype(o_ref.dtype)


def net_forward(x, w1, b1, w2, b2, *, tb=TB):
    """x: [B, 15] f32 -> [B, 3] f32.

    w1: [10, 15], b1: [10, 1], w2: [3, 10], b2: [3, 1] (PyTorch [out, in] layout).
    Internally batch is placed on the lane axis and tiled by `tb`.
    """
    B, in_dim = x.shape
    hid = w1.shape[0]
    out_dim = w2.shape[0]

    # Pad batch to a multiple of tb and transpose so batch sits on lanes.
    bp = pl.cdiv(B, tb) * tb
    x_t = jnp.zeros((in_dim, bp), jnp.bfloat16).at[:, :B].set(
        x.T.astype(jnp.bfloat16))
    w1b = w1.astype(jnp.bfloat16)
    w2b = w2.astype(jnp.bfloat16)

    out_t = pl.pallas_call(
        mlp_kernel,
        out_shape=jax.ShapeDtypeStruct((out_dim, bp), jnp.float32),
        grid=(bp // tb,),
        in_specs=[
            pl.BlockSpec((hid, in_dim), lambda i: (0, 0)),   # w1, resident
            pl.BlockSpec((hid, 1), lambda i: (0, 0)),        # b1, resident
            pl.BlockSpec((out_dim, hid), lambda i: (0, 0)),  # w2, resident
            pl.BlockSpec((out_dim, 1), lambda i: (0, 0)),    # b2, resident
            pl.BlockSpec((in_dim, tb), lambda i: (0, i)),    # x tile, streamed
        ],
        out_specs=pl.BlockSpec((out_dim, tb), lambda i: (0, i)),
        compiler_params=pltpu.CompilerParams(
            dimension_semantics=("parallel",)),
    )(w1b, b1, w2b, b2, x_t)

    return out_t[:, :B].T


if __name__ == "__main__":
    key = jax.random.PRNGKey(0)
    k_x, k_w1, k_b1, k_w2, k_b2 = jax.random.split(key, 5)

    # Parameters (deterministic; shapes from Net.__init__, [out, in] layout)
    w1 = _xavier_uniform(k_w1, (10, 15), fan_in=15, fan_out=10)  # fc1 weight
    b1 = _linear_bias(k_b1, fan_in=15, fan_out=10)               # fc1 bias [10, 1]
    w2 = _xavier_uniform(k_w2, (3, 10), fan_in=10, fan_out=3)    # fc2 weight
    b2 = _linear_bias(k_b2, fan_in=10, fan_out=3)                # fc2 bias [3, 1]
    # TODO(synk): PyTorch's default Linear weight init is kaiming-uniform; the
    # module overrides weights with xavier_uniform (replicated here), biases use
    # the default U(-1/sqrt(fan_in), 1/sqrt(fan_in)).

    # Small synthetic input batch
    B = 8
    x = jax.random.normal(k_x, (B, 15), dtype=jnp.float32)

    out = net_forward(x, w1, b1, w2, b2)
    out = jax.block_until_ready(out)

    # Pure-JAX reference (same bf16 casts on the streamed operands, f32 math)
    xb = x.astype(jnp.bfloat16).astype(jnp.float32)
    w1f = w1.astype(jnp.bfloat16).astype(jnp.float32)
    w2f = w2.astype(jnp.bfloat16).astype(jnp.float32)
    h_ref = jnp.maximum(xb @ w1f.T + b1.T, 0.0)
    y_ref = jnp.maximum(h_ref @ w2f.T + b2.T, 0.0)
    ref = jax.nn.sigmoid(y_ref)

    assert out.shape == (B, 3)
    assert jnp.allclose(out, ref, atol=2e-2, rtol=0), "mismatch vs reference"

    print("KERNEL_OK")
</pallas_src>

<mosaic_0001>
module attributes {stable_mosaic.version = 11 : i64} {
  func.func @mlp_kernel(%arg0: i32, %arg1: memref<10x15xbf16, #tpu.memory_space<vmem>>, %arg2: memref<10x1xf32, #tpu.memory_space<vmem>>, %arg3: memref<3x10xbf16, #tpu.memory_space<vmem>>, %arg4: memref<3x1xf32, #tpu.memory_space<vmem>>, %arg5: memref<15x256xbf16, #tpu.memory_space<vmem>>, %arg6: memref<3x256xf32, #tpu.memory_space<vmem>>) attributes {dimension_semantics = [#tpu.dimension_semantics<parallel>], iteration_bounds = array<i64: 1>, scalar_prefetch = 0 : i64, scratch_operands = 0 : i64, tpu.core_type = #tpu.core_type<tc>, window_params = [{pipeline_mode = #tpu.pipeline_mode<synchronous>, transform_indices = @transform_0, window_bounds = array<i64: 10, 15>}, {pipeline_mode = #tpu.pipeline_mode<synchronous>, transform_indices = @transform_1, window_bounds = array<i64: 10, 1>}, {pipeline_mode = #tpu.pipeline_mode<synchronous>, transform_indices = @transform_2, window_bounds = array<i64: 3, 10>}, {pipeline_mode = #tpu.pipeline_mode<synchronous>, transform_indices = @transform_3, window_bounds = array<i64: 3, 1>}, {transform_indices = @transform_4, window_bounds = array<i64: 15, 256>}, {transform_indices = @transform_5, window_bounds = array<i64: 3, 256>}]} {
    %c0 = arith.constant 0 : index
    %c0_0 = arith.constant 0 : index
    %0 = vector.load %arg1[%c0, %c0_0] : memref<10x15xbf16, #tpu.memory_space<vmem>>, vector<10x15xbf16>
    %c0_1 = arith.constant 0 : index
    %c0_2 = arith.constant 0 : index
    %1 = vector.load %arg5[%c0_1, %c0_2] : memref<15x256xbf16, #tpu.memory_space<vmem>>, vector<15x256xbf16>
    %cst = arith.constant dense<0.000000e+00> : vector<10x256xf32>
    %2 = tpu.matmul %0, %1, %cst {dimension_numbers = #tpu.dot_dimension_numbers<[1], [0], [0], [1], [0, 0, 1, 1], [], []>} : vector<10x15xbf16>, vector<15x256xbf16>, vector<10x256xf32> -> vector<10x256xf32>
    %c0_3 = arith.constant 0 : index
    %c0_4 = arith.constant 0 : index
    %3 = vector.load %arg2[%c0_3, %c0_4] : memref<10x1xf32, #tpu.memory_space<vmem>>, vector<10x1xf32>
    %4 = vector.broadcast %3 : vector<10x1xf32> to vector<10x256xf32>
    %5 = arith.addf %2, %4 : vector<10x256xf32>
    %cst_5 = arith.constant 0.000000e+00 : f32
    %6 = vector.broadcast %cst_5 : f32 to vector<10x256xf32>
    %7 = arith.maximumf %5, %6 : vector<10x256xf32>
    %c0_6 = arith.constant 0 : index
    %c0_7 = arith.constant 0 : index
    %8 = vector.load %arg3[%c0_6, %c0_7] : memref<3x10xbf16, #tpu.memory_space<vmem>>, vector<3x10xbf16>
    %9 = arith.truncf %7 : vector<10x256xf32> to vector<10x256xbf16>
    %cst_8 = arith.constant dense<0.000000e+00> : vector<3x256xf32>
    %10 = tpu.matmul %8, %9, %cst_8 {dimension_numbers = #tpu.dot_dimension_numbers<[1], [0], [0], [1], [0, 0, 1, 1], [], []>} : vector<3x10xbf16>, vector<10x256xbf16>, vector<3x256xf32> -> vector<3x256xf32>
    %c0_9 = arith.constant 0 : index
    %c0_10 = arith.constant 0 : index
    %11 = vector.load %arg4[%c0_9, %c0_10] : memref<3x1xf32, #tpu.memory_space<vmem>>, vector<3x1xf32>
    %12 = vector.broadcast %11 : vector<3x1xf32> to vector<3x256xf32>
    %13 = arith.addf %10, %12 : vector<3x256xf32>
    %cst_11 = arith.constant 0.000000e+00 : f32
    %14 = vector.broadcast %cst_11 : f32 to vector<3x256xf32>
    %15 = arith.maximumf %13, %14 : vector<3x256xf32>
    %cst_12 = arith.constant 0.000000e+00 : f32
    %16 = vector.broadcast %cst_12 : f32 to vector<3x256xf32>
    %17 = arith.subf %16, %15 : vector<3x256xf32>
    %18 = math.exp %17 : vector<3x256xf32>
    %cst_13 = arith.constant 1.000000e+00 : f32
    %19 = vector.broadcast %cst_13 : f32 to vector<3x256xf32>
    %20 = arith.addf %19, %18 : vector<3x256xf32>
    %21 = tpu.reciprocal %20 {approx = true} : vector<3x256xf32> -> vector<3x256xf32>
    %c0_14 = arith.constant 0 : index
    %c0_15 = arith.constant 0 : index
    %22 = vector.load %arg6[%c0_14, %c0_15] : memref<3x256xf32, #tpu.memory_space<vmem>>, vector<3x256xf32>
    tpu.vector_store %arg6[%c0_14, %c0_15], %21 {strides = array<i32>} : memref<3x256xf32, #tpu.memory_space<vmem>>, vector<3x256xf32>,
    return
  }
  func.func @transform_0(%arg0: i32) -> (i32, i32) {
    %c0_i32 = arith.constant 0 : i32
    %c0_i32_0 = arith.constant 0 : i32
    %c0_i32_1 = arith.constant 0 : i32
    return %c0_i32, %c0_i32_0 : i32, i32
  }
  func.func @transform_1(%arg0: i32) -> (i32, i32) {
    %c0_i32 = arith.constant 0 : i32
    %c0_i32_0 = arith.constant 0 : i32
    %c0_i32_1 = arith.constant 0 : i32
    return %c0_i32, %c0_i32_0 : i32, i32
  }
  func.func @transform_2(%arg0: i32) -> (i32, i32) {
    %c0_i32 = arith.constant 0 : i32
    %c0_i32_0 = arith.constant 0 : i32
    %c0_i32_1 = arith.constant 0 : i32
    return %c0_i32, %c0_i32_0 : i32, i32
  }
  func.func @transform_3(%arg0: i32) -> (i32, i32) {
    %c0_i32 = arith.constant 0 : i32
    %c0_i32_0 = arith.constant 0 : i32
    %c0_i32_1 = arith.constant 0 : i32
    return %c0_i32, %c0_i32_0 : i32, i32
  }
  func.func @transform_4(%arg0: i32) -> (i32, i32) {
    %c0_i32 = arith.constant 0 : i32
    %c0_i32_0 = arith.constant 0 : i32
    return %c0_i32, %arg0 : i32, i32
  }
  func.func @transform_5(%arg0: i32) -> (i32, i32) {
    %c0_i32 = arith.constant 0 : i32
    %c0_i32_0 = arith.constant 0 : i32
    return %c0_i32, %arg0 : i32, i32
  }
}

</mosaic_0001>

<llo_original>
// kernel: tpu_custom_call.1
$region0: #{tpu_custom_call.1}
  #allocation0 [shape = 'u32[]', space=smem, size = 0x4, offset = 0x4, fixed_abs, tag = 'smem constant byte address 0x4 - core index']
  #allocation1 [shape = 'u32[144,128]{1,0:T(1,128)}', space=vmem, size = 0x12000, scoped, tag = 'internal scratch']
  %s0 = inlined_call_operand.vmem [shape: bf16[10,15], index: 0, kind: input, shape index: {}]
  %s1 = inlined_call_operand.vmem [shape: f32[10,1], index: 1, kind: input, shape index: {}]
  %s2 = inlined_call_operand.vmem [shape: bf16[3,10], index: 2, kind: input, shape index: {}]
  %s3 = inlined_call_operand.vmem [shape: f32[3,1], index: 3, kind: input, shape index: {}]
  %s4 = inlined_call_operand.vmem [shape: bf16[15,256], index: 4, kind: input, shape index: {}]
  %s5 = inlined_call_operand.hbm [shape: f32[3,256], index: 5, kind: output, shape index: {}]
  %s6 = sld [smem:[#allocation0]]
  $region30: #{tpu_custom_call.1} parent=0
    _
  %s8 = ssub.s32 1, %s6
  %s9 = scalar_select 0, %s8, %s6
  $region1: #{tpu_custom_call.1} parent=0
    #allocation2 [shape = 'u8[4096]{0}', space=vmem, size = 0x1000, scoped, tag = 'output window, operand 0, single buffered']
    #allocation3 [shape = 's32[1]{0}', space=sflag, size = 0x4, scoped, tag = 'scoped memory for tpu_custom_call.1']
    %10 = vsyncpa [#allocation3], 0
    // Predicated region
    $region2: #{tpu_custom_call.1} parent=1 // pred_check
      _
    $region3: #{tpu_custom_call.1} parent=1 // pred_check_branch
      %12 = sbr.rel (0) target = $region5
    $region4: #{tpu_custom_call.1} parent=1 // pred_region
      _
    $region5: #{tpu_custom_call.1} parent=1 // pred_fallthru
      _
    // Predicated region
    $region6: #{tpu_custom_call.1} parent=1 // pred_check
      _
    $region7: #{tpu_custom_call.1} parent=1 // pred_check_branch
      %14 = sbr.rel (0) target = $region9
    $region8: #{tpu_custom_call.1} parent=1 // pred_region
      _
    $region9: #{tpu_custom_call.1} parent=1 // pred_fallthru
      _
    // Predicated region
    $region10: #{tpu_custom_call.1} parent=1 // pred_check
      _
    $region11: #{tpu_custom_call.1} parent=1 // pred_check_branch
      %16 = sbr.rel (0) target = $region13
    $region12: #{tpu_custom_call.1} parent=1 // pred_region
      _
    $region13: #{tpu_custom_call.1} parent=1 // pred_fallthru
      _
    // Predicated region
    $region14: #{tpu_custom_call.1} parent=1 // pred_check
      _
    $region15: #{tpu_custom_call.1} parent=1 // pred_check_branch
      %18 = sbr.rel (0) target = $region17
    $region16: #{tpu_custom_call.1} parent=1 // pred_region
      _
    $region17: #{tpu_custom_call.1} parent=1 // pred_fallthru
      _
    // Predicated region
    $region18: #{tpu_custom_call.1} parent=1 // pred_check
      _
    $region19: #{tpu_custom_call.1} parent=1 // pred_check_branch
      %20 = sbr.rel (0) target = $region21
    $region20: #{tpu_custom_call.1} parent=1 // pred_region
      _
    $region21: #{tpu_custom_call.1} parent=1 // pred_fallthru
      _
    %v22 = vld [vmem:[%s0] sm:$0xf]
    %v23 = vld [vmem:[%s0 + $0x4] sm:$0x1]
    %v24 = vld [vmem:[%s4] sm:$0xff]
    %v25 = vld [vmem:[%s4 + $0x8] sm:$0xff]
    %v26 = vld [vmem:[%s1] sm:$0xff]
    %v27 = vld [vmem:[%s1 + $0x8] sm:$0x3]
    %29 = vset.pattern.permute.xlu0 0
    %30 = vperm.xlu0 %29, %v26
    %v31 = vpop.permute.xlu0 %30
    %34 = vset.pattern.permute.xlu0 0
    %35 = vperm.xlu0 %34, %v27
    %v36 = vpop.permute.xlu0 %35
    %v40 = vunpack.c.l.b16 %v22
    %v41 = vunpack.c.l.b16 %v23
    %v42 = vpack.c.b16 %v41, %v40
    %v45 = vunpack.c.l.b16 %v24
    %v46 = vunpack.c.h.b16 %v24
    %v47 = vunpack.c.l.b16 %v25
    %v48 = vunpack.c.h.b16 %v25
    %v49 = vpack.c.b16 %v47, %v45
    %v50 = vpack.c.b16 %v48, %v46
    %vm51 = vcmask 121856
    %v53 = vsel %vm51, %v42, 0
    %vm55 = vcmask 1046528
    %vm56 = vcmask 1047552
    %v57 = vsel %vm55, 4294967295, 65535
    %v58 = vsel %vm56, %v57, 0
    %v60 = vand.u32 %v49, %v58
    %v63 = vand.u32 %v50, %v58
    %65 = vmatprep.subr.bf16.mxu0 %v63
    %66 = vmatpush1.bf16.msra.mxu0 %v60
    %67 = vmatprep.subr.bf16.mxu0 0
    %68 = vmatpush1.bf16.msra.mxu0 0
    %69 = vmatprep.subr.bf16.mxu0 0
    %70 = vmatpush1.bf16.msra.mxu0 0
    %71 = vmatprep.subr.bf16.mxu0 0
    %72 = vmatpush1.bf16.msra.mxu0 0
    %73 = vmatprep.subr.bf16.mxu0 0
    %74 = vmatpush1.bf16.msra.mxu0 0
    %75 = vmatprep.subr.bf16.mxu0 0
    %76 = vmatpush1.bf16.msra.mxu0 0
    %77 = vmatprep.subr.bf16.mxu0 0
    %78 = vmatpush1.bf16.msra.mxu0 0
    %79 = vmatprep.subr.bf16.mxu0 0
    %80 = vmatpush1.bf16.msra.mxu0 0
    %81 = vmatprep.subr.bf16.mxu0 0
    %82 = vmatpush1.bf16.msra.mxu0 0
    %83 = vmatprep.subr.bf16.mxu0 0
    %84 = vmatpush1.bf16.msra.mxu0 0
    %85 = vmatprep.subr.bf16.mxu0 0
    %86 = vmatpush1.bf16.msra.mxu0 0
    %87 = vmatprep.subr.bf16.mxu0 0
    %88 = vmatpush1.bf16.msra.mxu0 0
    %89 = vmatprep.subr.bf16.mxu0 0
    %90 = vmatpush1.bf16.msra.mxu0 0
    %91 = vmatprep.subr.bf16.mxu0 0
    %92 = vmatpush1.bf16.msra.mxu0 0
    %93 = vmatprep.subr.bf16.mxu0 0
    %94 = vmatpush1.bf16.msra.mxu0 0
    %95 = vmatprep.subr.bf16.mxu0 0
    %96 = vmatpush1.bf16.msra.mxu0 0
    %97 = vmatprep.mubr.bf16.mxu0 0
    %98 = vmatmul.mubr.bf16.gmra.mrb[0].mxu0 %v53
    %v99 = vpop.f32.mrb[0].mxu0
    %v100 = vadd.f32 %v31, %v99
    %v101 = vpop.f32.mrb[0].mxu0
    %v102 = vadd.f32 %v31, %v101
    %v103 = vpop.f32.mrb[0].mxu0
    %v104 = vadd.f32 %v36, %v103
    %v105 = vpop.f32.mrb[0].mxu0
    %v106 = vadd.f32 %v36, %v105
    %107 = vdwg.mxu0
    %v108 = vmax.f32 %v100, 0.0
    %v109 = vmax.f32 %v102, 0.0
    %v110 = vmax.f32 %v104, 0.0
    %v111 = vmax.f32 %v106, 0.0
    %v112 = vld [vmem:[%s2] sm:$0x3]
    %v113 = vpack.c.bf16 %v110, %v108
    %v114 = vpack.c.bf16 %v111, %v109
    %v115 = vld [vmem:[%s3] sm:$0x7]
    %117 = vset.pattern.permute.xlu0 0
    %118 = vperm.xlu0 %117, %v115
    %v119 = vpop.permute.xlu0 %118
    %vm121 = vcmask 80896
    %v123 = vsel %vm121, %v112, 0
    %vm125 = vcmask 1044480
    %v127 = vsel %vm125, %v113, 0
    %v130 = vsel %vm125, %v114, 0
    %132 = vmatprep.subr.bf16.mxu0 %v130
    %133 = vmatpush1.bf16.msra.mxu0 %v127
    %134 = vmatprep.subr.bf16.mxu0 0
    %135 = vmatpush1.bf16.msra.mxu0 0
    %136 = vmatprep.subr.bf16.mxu0 0
    %137 = vmatpush1.bf16.msra.mxu0 0
    %138 = vmatprep.subr.bf16.mxu0 0
    %139 = vmatpush1.bf16.msra.mxu0 0
    %140 = vmatprep.subr.bf16.mxu0 0
    %141 = vmatpush1.bf16.msra.mxu0 0
    %142 = vmatprep.subr.bf16.mxu0 0
    %143 = vmatpush1.bf16.msra.mxu0 0
    %144 = vmatprep.subr.bf16.mxu0 0
    %145 = vmatpush1.bf16.msra.mxu0 0
    %146 = vmatprep.subr.bf16.mxu0 0
    %147 = vmatpush1.bf16.msra.mxu0 0
    %148 = vmatprep.subr.bf16.mxu0 0
    %149 = vmatpush1.bf16.msra.mxu0 0
    %150 = vmatprep.subr.bf16.mxu0 0
    %151 = vmatpush1.bf16.msra.mxu0 0
    %152 = vmatprep.subr.bf16.mxu0 0
    %153 = vmatpush1.bf16.msra.mxu0 0
    %154 = vmatprep.subr.bf16.mxu0 0
    %155 = vmatpush1.bf16.msra.mxu0 0
    %156 = vmatprep.subr.bf16.mxu0 0
    %157 = vmatpush1.bf16.msra.mxu0 0
    %158 = vmatprep.subr.bf16.mxu0 0
    %159 = vmatpush1.bf16.msra.mxu0 0
    %160 = vmatprep.subr.bf16.mxu0 0
    %161 = vmatpush1.bf16.msra.mxu0 0
    %162 = vmatprep.subr.bf16.mxu0 0
    %163 = vmatpush1.bf16.msra.mxu0 0
    %164 = vmatprep.mubr.bf16.mxu0 0
    %165 = vmatmul.mubr.bf16.gmra.mrb[0].mxu0 %v123
    %v166 = vpop.f32.mrb[0].mxu0
    %v167 = vadd.f32 %v119, %v166
    %v168 = vpop.f32.mrb[0].mxu0
    %v169 = vadd.f32 %v119, %v168
    %v170 = vpop.f32.mrb[0].mxu0
    %v171 = vpop.f32.mrb[0].mxu0
    %172 = vdwg.mxu0
    %v173 = vmax.f32 %v167, 0.0
    %v174 = vmax.f32 %v169, 0.0
    %v175 = vsub.f32 0.0, %v173
    %v176 = vsub.f32 0.0, %v174
    %v177 = vmul.f32 %v175, 1.442695
    %v178 = vpow.pop %v177
    %v179 = vmul.f32 %v176, 1.442695
    %v180 = vpow.pop %v179
    %v181 = vadd.f32 %v178, 1.0
    %v182 = vadd.f32 %v180, 1.0
    %v183 = vrcp.pop %v181
    %v184 = vrcp.pop %v182
    %v187 = vcombine.low %v183, %v184
    %189 = vst [vmem:[#allocation2] sm:$0x77] %v187
    // Predicated region
    $region22: #{tpu_custom_call.1} parent=1 // pred_check
      _
    $region23: #{tpu_custom_call.1} parent=1 // pred_check_branch
      %191 = sbr.rel (0) target = $region25
    $region24: #{tpu_custom_call.1} parent=1 // pred_region
      %s193 = ssub.s32 128, 128
      %194 = vsyncadd [#allocation3], %s193
      %s196 = sshll.u32 [#allocation2], 4
      %s197 = int_to_ptr.vmem [resolvable:$true] %s196
      %199 = dma.vmem_to_hbm [thread:$0]  %s197, 128, %s5, [#allocation3]
    $region25: #{tpu_custom_call.1} parent=1 // pred_fallthru
      _
    // Predicated region
    $region26: #{tpu_custom_call.1} parent=1 // pred_check
      _
    $region27: #{tpu_custom_call.1} parent=1 // pred_check_branch
      %201 = sbr.rel (0) target = $region29
    $region28: #{tpu_custom_call.1} parent=1 // pred_region
      %202 = dma.done [#allocation3], 128
    $region29: #{tpu_custom_call.1} parent=1 // pred_fallthru
      _
    %203 = vsyncpa [#allocation3], 1

</llo_original>
